<compile_context>
chip_gen: v7x
topology: tpu7x:2x2x1
jax: 0.10.0
libtpu: 0.0.40
codegen_flags: <defaults>
</compile_context>

<pallas_src>
import functools

import jax
import jax.numpy as jnp
import numpy as np
from jax import lax
from jax.experimental import pallas as pl
from jax.experimental.pallas import tpu as pltpu

_MIB = 1024 * 1024


def _sdpa_kernel(q_ref, k_ref, v_ref, out_ref, attn_ref, log_attn_ref, *,
                 inv_temperature: float, fold_scale_into_q: bool):
    # Leading batch dim is squeezed by the BlockSpecs, so refs are 2-D:
    #   q_ref: (tq, D), k_ref: (Lk, D), v_ref: (Lk, Dv)
    q = q_ref[...]
    if fold_scale_into_q:
        q = q * jnp.asarray(inv_temperature, q.dtype)
    k = k_ref[...]
    v = v_ref[...]

    # scores = (q @ k^T) / temperature — contraction on the shared last axis
    # (no explicit transpose), f32 accumulation on the MXU.
    scores = lax.dot_general(q, k, (((1,), (1,)), ((), ())),
                             preferred_element_type=jnp.float32)
    if not fold_scale_into_q:
        scores = scores * jnp.float32(inv_temperature)

    # Numerically-stable softmax / log-softmax along the key axis (dim=2).
    m = jnp.max(scores, axis=-1, keepdims=True)
    shifted = scores - m
    e = jnp.exp(shifted)
    denom = jnp.sum(e, axis=-1, keepdims=True)
    inv_denom = pl.reciprocal(denom, approx=False)   # exact; keeps 1e-5 parity
    attn = e * inv_denom                             # softmax
    log_attn = shifted - jnp.log(denom)              # log_softmax

    # output = attn @ v  (feed MXU in v's dtype, accumulate in f32)
    out = jnp.dot(attn.astype(v.dtype), v, preferred_element_type=jnp.float32)

    out_ref[...] = out.astype(out_ref.dtype)
    attn_ref[...] = attn.astype(attn_ref.dtype)
    log_attn_ref[...] = log_attn.astype(log_attn_ref.dtype)


def _physical_vmem_bytes() -> int:
    """Physical VMEM per core; conservative 64 MiB (v7x) if unknown."""
    try:
        return int(pltpu.get_tpu_info().vmem_capacity_bytes)
    except Exception:
        return 64 * _MIB


def _estimate_vmem_bytes(tq, Lk, D, Dv, in_itemsize, out_itemsize,
                         attn_itemsize) -> int:
    """Per-step VMEM working set for a (tq)-wide query tile."""
    # Pipeline blocks are double-buffered by default.
    blocks = 2 * (tq * D + Lk * D + Lk * Dv) * in_itemsize      # q, K, V
    blocks += 2 * tq * Dv * out_itemsize                        # output
    blocks += 2 * 2 * tq * Lk * attn_itemsize                   # attn, log_attn
    # Live f32 intermediates inside the body (scores/shifted/e/attn/log_attn,
    # assume the compiler reuses some of them) + the f32 output accumulator.
    intermediates = 4 * tq * Lk * 4 + tq * Dv * 4
    return blocks + intermediates


def _pick_q_tile(Lq, Lk, D, Dv, in_itemsize, out_itemsize, attn_itemsize,
                 vmem_budget) -> int:
    """Largest query tile whose working set fits the VMEM budget."""
    candidates = [t for t in (1024, 512, 256, 128, 64, 32, 16, 8) if t <= Lq]
    if not candidates:
        return Lq                      # tiny Lq -> full extent (always legal)
    for t in candidates:
        if _estimate_vmem_bytes(t, Lk, D, Dv, in_itemsize, out_itemsize,
                                attn_itemsize) <= vmem_budget:
            return t
    return candidates[-1]              # smallest tile; vmem_limit covers it


def _dimension_semantics(B, n_q_tiles):
    """CORE_PARALLEL on v7x (2 TCs per chip); plain semantics elsewhere."""
    try:
        kind = jax.devices()[0].device_kind.lower()
    except Exception:
        kind = ""
    if "v7" in kind:
        if B >= 2:
            return (pltpu.CORE_PARALLEL, pltpu.ARBITRARY)
        if n_q_tiles >= 2:
            return (pltpu.ARBITRARY, pltpu.CORE_PARALLEL)
    return ("parallel", "arbitrary")


def scaled_dot_product_attention(q, k, v, temperature, attn_dtype=None):
    """Pallas TPU scaled dot-product attention.

    q: (B, Lq, D), k: (B, Lk, D), v: (B, Lk, Dv) -> (output, attn, log_attn)

    attn_dtype: optional narrower dtype (e.g. jnp.bfloat16) for the attn /
    log_attn outputs — for large Lk the kernel is HBM-write bound on these two
    (B, Lq, Lk) matrices. Default keeps q.dtype for exact reference parity.
    """
    B, Lq, D = q.shape
    _, Lk, Dk = k.shape
    _, _, Dv = v.shape
    assert Dk == D and k.shape[0] == B and v.shape[0] == B and v.shape[1] == Lk

    out_dtype = q.dtype
    attn_out_dtype = jnp.dtype(attn_dtype) if attn_dtype is not None else q.dtype

    in_itemsize = jnp.dtype(q.dtype).itemsize
    out_itemsize = jnp.dtype(out_dtype).itemsize
    attn_itemsize = jnp.dtype(attn_out_dtype).itemsize

    phys_vmem = _physical_vmem_bytes()
    vmem_budget = (phys_vmem * 5) // 8          # per-step working-set target
    vmem_cap = (phys_vmem * 7) // 8             # hard ceiling with headroom

    tq = _pick_q_tile(Lq, Lk, D, Dv, in_itemsize, out_itemsize, attn_itemsize,
                      vmem_budget)
    n_q_tiles = pl.cdiv(Lq, tq)                 # ragged last block handled by Pallas

    needed = _estimate_vmem_bytes(tq, Lk, D, Dv, in_itemsize, out_itemsize,
                                  attn_itemsize)
    vmem_limit = int(min(vmem_cap, max(needed + 4 * _MIB, 32 * _MIB)))

    # Fold 1/temperature into q only when exact (f32); otherwise scale the f32
    # scores so bf16 inputs still match the post-matmul divide of the reference.
    fold_scale_into_q = (jnp.dtype(q.dtype) == jnp.float32)

    kernel = functools.partial(_sdpa_kernel,
                               inv_temperature=1.0 / float(temperature),
                               fold_scale_into_q=fold_scale_into_q)

    out_shapes = (
        jax.ShapeDtypeStruct((B, Lq, Dv), out_dtype),        # output
        jax.ShapeDtypeStruct((B, Lq, Lk), attn_out_dtype),   # attn
        jax.ShapeDtypeStruct((B, Lq, Lk), attn_out_dtype),   # log_attn
    )

    grid_spec = pltpu.PrefetchScalarGridSpec(
        num_scalar_prefetch=0,
        grid=(B, n_q_tiles),
        in_specs=[
            # q is tiled over the query axis; leading batch dim squeezed.
            pl.BlockSpec((None, tq, D), lambda b, qi: (b, qi, 0)),
            # K / V: same block for every q-tile -> stay resident in VMEM.
            pl.BlockSpec((None, Lk, D), lambda b, qi: (b, 0, 0)),
            pl.BlockSpec((None, Lk, Dv), lambda b, qi: (b, 0, 0)),
        ],
        out_specs=(
            # TODO(synk): for Dv < 128 this output store is lane-masked; a
            # lane-dense layout needs wrapper-side head folding.
            pl.BlockSpec((None, tq, Dv), lambda b, qi: (b, qi, 0)),
            pl.BlockSpec((None, tq, Lk), lambda b, qi: (b, qi, 0)),
            pl.BlockSpec((None, tq, Lk), lambda b, qi: (b, qi, 0)),
        ),
    )

    flops = 2 * B * Lq * Lk * (D + Dv)
    transcendentals = 2 * B * Lq * Lk                 # exp + log work
    bytes_accessed = (B * (Lq * D + Lk * D + Lk * Dv) * in_itemsize
                      + B * Lq * Dv * out_itemsize
                      + 2 * B * Lq * Lk * attn_itemsize)

    return pl.pallas_call(
        kernel,
        out_shape=out_shapes,
        grid_spec=grid_spec,
        compiler_params=pltpu.CompilerParams(
            dimension_semantics=_dimension_semantics(B, n_q_tiles),
            vmem_limit_bytes=vmem_limit),
        cost_estimate=pl.CostEstimate(flops=flops,
                                      transcendentals=transcendentals,
                                      bytes_accessed=bytes_accessed),
    )(q, k, v)


def _reference(q, k, v, temperature):
    attn = jnp.einsum("bqd,bkd->bqk", q, k) / temperature
    log_attn = jax.nn.log_softmax(attn, axis=2)
    attn = jax.nn.softmax(attn, axis=2)
    out = jnp.einsum("bqk,bkd->bqd", attn, v)
    return out, attn, log_attn


if __name__ == "__main__":
    # Small shapes consistent with the module's bmm-based forward.
    B, Lq, Lk, D, Dv = 2, 8, 16, 32, 32
    temperature = float(np.sqrt(D))

    key = jax.random.PRNGKey(0)
    kq, kk, kv = jax.random.split(key, 3)
    q = jax.random.normal(kq, (B, Lq, D), dtype=jnp.float32)
    k = jax.random.normal(kk, (B, Lk, D), dtype=jnp.float32)
    v = jax.random.normal(kv, (B, Lk, Dv), dtype=jnp.float32)

    out, attn, log_attn = scaled_dot_product_attention(q, k, v, temperature)
    jax.block_until_ready((out, attn, log_attn))

    ref_out, ref_attn, ref_log_attn = _reference(q, k, v, temperature)
    np.testing.assert_allclose(np.asarray(out), np.asarray(ref_out),
                               rtol=1e-5, atol=1e-5)
    np.testing.assert_allclose(np.asarray(attn), np.asarray(ref_attn),
                               rtol=1e-5, atol=1e-5)
    np.testing.assert_allclose(np.asarray(log_attn), np.asarray(ref_log_attn),
                               rtol=1e-5, atol=1e-5)

    print("KERNEL_OK")
</pallas_src>

<mosaic_0001>
module attributes {stable_mosaic.version = 11 : i64} {
  func.func @_sdpa_kernel(%arg0: i32, %arg1: i32, %arg2: memref<1x8x32xf32, #tpu.memory_space<vmem>>, %arg3: memref<1x16x32xf32, #tpu.memory_space<vmem>>, %arg4: memref<1x16x32xf32, #tpu.memory_space<vmem>>, %arg5: memref<1x8x32xf32, #tpu.memory_space<vmem>>, %arg6: memref<1x8x16xf32, #tpu.memory_space<vmem>>, %arg7: memref<1x8x16xf32, #tpu.memory_space<vmem>>) attributes {dimension_semantics = [#tpu.dimension_semantics<parallel>, #tpu.dimension_semantics<arbitrary>], iteration_bounds = array<i64: 2, 1>, scalar_prefetch = 0 : i64, scratch_operands = 0 : i64, tpu.core_type = #tpu.core_type<tc>, window_params = [{transform_indices = @transform_0, window_bounds = array<i64: 1, 8, 32>}, {transform_indices = @transform_1, window_bounds = array<i64: 1, 16, 32>}, {transform_indices = @transform_2, window_bounds = array<i64: 1, 16, 32>}, {transform_indices = @transform_3, window_bounds = array<i64: 1, 8, 32>}, {transform_indices = @transform_4, window_bounds = array<i64: 1, 8, 16>}, {transform_indices = @transform_5, window_bounds = array<i64: 1, 8, 16>}]} {
    %c0 = arith.constant 0 : index
    %c0_0 = arith.constant 0 : index
    %c0_1 = arith.constant 0 : index
    %0 = vector.load %arg2[%c0, %c0_0, %c0_1] : memref<1x8x32xf32, #tpu.memory_space<vmem>>, vector<1x8x32xf32>
    %1 = vector.shape_cast %0 : vector<1x8x32xf32> to vector<8x32xf32>
    %cst = arith.constant 0.176776692 : f32
    %2 = vector.broadcast %cst : f32 to vector<8x32xf32>
    %3 = arith.mulf %1, %2 : vector<8x32xf32>
    %c0_2 = arith.constant 0 : index
    %c0_3 = arith.constant 0 : index
    %c0_4 = arith.constant 0 : index
    %4 = vector.load %arg3[%c0_2, %c0_3, %c0_4] : memref<1x16x32xf32, #tpu.memory_space<vmem>>, vector<1x16x32xf32>
    %5 = vector.shape_cast %4 : vector<1x16x32xf32> to vector<16x32xf32>
    %c0_5 = arith.constant 0 : index
    %c0_6 = arith.constant 0 : index
    %c0_7 = arith.constant 0 : index
    %6 = vector.load %arg4[%c0_5, %c0_6, %c0_7] : memref<1x16x32xf32, #tpu.memory_space<vmem>>, vector<1x16x32xf32>
    %7 = vector.shape_cast %6 : vector<1x16x32xf32> to vector<16x32xf32>
    %cst_8 = arith.constant dense<0.000000e+00> : vector<8x16xf32>
    %8 = tpu.matmul %3, %5, %cst_8 {dimension_numbers = #tpu.dot_dimension_numbers<[1], [1], [0], [0], [0, 0, 1, 0], [], []>} : vector<8x32xf32>, vector<16x32xf32>, vector<8x16xf32> -> vector<8x16xf32>
    %cst_9 = arith.constant dense<0xFF800000> : vector<8xf32>
    %9 = vector.multi_reduction <maximumf>, %8, %cst_9 [1] : vector<8x16xf32> to vector<8xf32>
    %10 = vector.shape_cast %9 : vector<8xf32> to vector<8x1xf32>
    %11 = vector.broadcast %10 : vector<8x1xf32> to vector<8x16xf32>
    %12 = arith.subf %8, %11 : vector<8x16xf32>
    %13 = math.exp %12 : vector<8x16xf32>
    %cst_10 = arith.constant dense<0.000000e+00> : vector<8xf32>
    %14 = vector.multi_reduction <add>, %13, %cst_10 [1] : vector<8x16xf32> to vector<8xf32>
    %15 = vector.shape_cast %14 : vector<8xf32> to vector<8x1xf32>
    %16 = tpu.reciprocal %15 : vector<8x1xf32> -> vector<8x1xf32>
    %17 = vector.broadcast %16 : vector<8x1xf32> to vector<8x16xf32>
    %18 = arith.mulf %13, %17 : vector<8x16xf32>
    %19 = math.log %15 : vector<8x1xf32>
    %20 = vector.broadcast %19 : vector<8x1xf32> to vector<8x16xf32>
    %21 = arith.subf %12, %20 : vector<8x16xf32>
    %cst_11 = arith.constant dense<0.000000e+00> : vector<8x32xf32>
    %22 = tpu.matmul %18, %7, %cst_11 {dimension_numbers = #tpu.dot_dimension_numbers<[1], [0], [0], [1], [0, 0, 1, 1], [], []>} : vector<8x16xf32>, vector<16x32xf32>, vector<8x32xf32> -> vector<8x32xf32>
    %c0_12 = arith.constant 0 : index
    %c0_13 = arith.constant 0 : index
    %c0_14 = arith.constant 0 : index
    %23 = vector.load %arg5[%c0_12, %c0_13, %c0_14] : memref<1x8x32xf32, #tpu.memory_space<vmem>>, vector<1x8x32xf32>
    %24 = vector.shape_cast %23 : vector<1x8x32xf32> to vector<8x32xf32>
    %25 = vector.shape_cast %22 : vector<8x32xf32> to vector<1x8x32xf32>
    tpu.vector_store %arg5[%c0_12, %c0_13, %c0_14], %25 {strides = array<i32>} : memref<1x8x32xf32, #tpu.memory_space<vmem>>, vector<1x8x32xf32>,
    %c0_15 = arith.constant 0 : index
    %c0_16 = arith.constant 0 : index
    %c0_17 = arith.constant 0 : index
    %26 = vector.load %arg6[%c0_15, %c0_16, %c0_17] : memref<1x8x16xf32, #tpu.memory_space<vmem>>, vector<1x8x16xf32>
    %27 = vector.shape_cast %26 : vector<1x8x16xf32> to vector<8x16xf32>
    %28 = vector.shape_cast %18 : vector<8x16xf32> to vector<1x8x16xf32>
    tpu.vector_store %arg6[%c0_15, %c0_16, %c0_17], %28 {strides = array<i32>} : memref<1x8x16xf32, #tpu.memory_space<vmem>>, vector<1x8x16xf32>,
    %c0_18 = arith.constant 0 : index
    %c0_19 = arith.constant 0 : index
    %c0_20 = arith.constant 0 : index
    %29 = vector.load %arg7[%c0_18, %c0_19, %c0_20] : memref<1x8x16xf32, #tpu.memory_space<vmem>>, vector<1x8x16xf32>
    %30 = vector.shape_cast %29 : vector<1x8x16xf32> to vector<8x16xf32>
    %31 = vector.shape_cast %21 : vector<8x16xf32> to vector<1x8x16xf32>
    tpu.vector_store %arg7[%c0_18, %c0_19, %c0_20], %31 {strides = array<i32>} : memref<1x8x16xf32, #tpu.memory_space<vmem>>, vector<1x8x16xf32>,
    return
  }
  func.func @transform_0(%arg0: i32, %arg1: i32) -> (i32, i32, i32) {
    %c0_i32 = arith.constant 0 : i32
    %c0_i32_0 = arith.constant 0 : i32
    return %arg0, %arg1, %c0_i32 : i32, i32, i32
  }
  func.func @transform_1(%arg0: i32, %arg1: i32) -> (i32, i32, i32) {
    %c0_i32 = arith.constant 0 : i32
    %c0_i32_0 = arith.constant 0 : i32
    %c0_i32_1 = arith.constant 0 : i32
    return %arg0, %c0_i32, %c0_i32_0 : i32, i32, i32
  }
  func.func @transform_2(%arg0: i32, %arg1: i32) -> (i32, i32, i32) {
    %c0_i32 = arith.constant 0 : i32
    %c0_i32_0 = arith.constant 0 : i32
    %c0_i32_1 = arith.constant 0 : i32
    return %arg0, %c0_i32, %c0_i32_0 : i32, i32, i32
  }
  func.func @transform_3(%arg0: i32, %arg1: i32) -> (i32, i32, i32) {
    %c0_i32 = arith.constant 0 : i32
    %c0_i32_0 = arith.constant 0 : i32
    return %arg0, %arg1, %c0_i32 : i32, i32, i32
  }
  func.func @transform_4(%arg0: i32, %arg1: i32) -> (i32, i32, i32) {
    %c0_i32 = arith.constant 0 : i32
    %c0_i32_0 = arith.constant 0 : i32
    return %arg0, %arg1, %c0_i32 : i32, i32, i32
  }
  func.func @transform_5(%arg0: i32, %arg1: i32) -> (i32, i32, i32) {
    %c0_i32 = arith.constant 0 : i32
    %c0_i32_0 = arith.constant 0 : i32
    return %arg0, %arg1, %c0_i32 : i32, i32, i32
  }
}

</mosaic_0001>

<llo_original>
// kernel: tpu_custom_call.1
$region0: #{tpu_custom_call.1}
  #allocation0 [shape = 'u32[]', space=smem, size = 0x4, offset = 0x4, fixed_abs, tag = 'smem constant byte address 0x4 - core index']
  #allocation1 [shape = 'u32[144,128]{1,0:T(1,128)}', space=vmem, size = 0x12000, scoped, tag = 'internal scratch']
  %s0 = inlined_call_operand.hbm [shape: f32[2,8,32], index: 0, kind: input, shape index: {}]
  %s1 = inlined_call_operand.hbm [shape: f32[2,16,32], index: 1, kind: input, shape index: {}]
  %s2 = inlined_call_operand.hbm [shape: f32[2,16,32], index: 2, kind: input, shape index: {}]
  %s3 = inlined_call_operand.hbm [shape: f32[2,8,32], index: 3, kind: output, shape index: {0}]
  %s4 = inlined_call_operand.hbm [shape: f32[2,8,16], index: 4, kind: output, shape index: {1}]
  %s5 = inlined_call_operand.hbm [shape: f32[2,8,16], index: 5, kind: output, shape index: {2}]
  %6 = xla_tuple %s3, %s4, %s5
  %s7 = sld [smem:[#allocation0]]
  $region73: #{tpu_custom_call.1} parent=0
    _
  %s9 = ssub.s32 1, %s7
  %s10 = scalar_select 0, %s9, %s7
  $region1: #{tpu_custom_call.1} parent=0
    #allocation2 [shape = 'u8[8192]{0}', space=vmem, size = 0x2000, scoped, tag = 'input window, operand 0']
    #allocation3 [shape = 's32[2]{0}', space=sflag, size = 0x8, scoped, tag = 'scoped memory for tpu_custom_call.1']
    #allocation4 [shape = 's32[2]{0}', space=sflag, size = 0x8, scoped, tag = 'scoped memory for tpu_custom_call.1']
    #allocation5 [shape = 'u8[16384]{0}', space=vmem, size = 0x4000, scoped, tag = 'input window, operand 1']
    #allocation6 [shape = 's32[2]{0}', space=sflag, size = 0x8, scoped, tag = 'scoped memory for tpu_custom_call.1']
    #allocation7 [shape = 'u8[16384]{0}', space=vmem, size = 0x4000, scoped, tag = 'input window, operand 2']
    #allocation8 [shape = 'u8[8192]{0}', space=vmem, size = 0x2000, scoped, tag = 'output window, operand 0']
    #allocation9 [shape = 'u8[8192]{0}', space=vmem, size = 0x2000, scoped, tag = 'output window, operand 1']
    #allocation10 [shape = 's32[2]{0}', space=sflag, size = 0x8, scoped, tag = 'scoped memory for tpu_custom_call.1']
    #allocation11 [shape = 'u8[8192]{0}', space=vmem, size = 0x2000, scoped, tag = 'output window, operand 2']
    %11 = vsyncpa [#allocation3], 0
    %s12 = scalar_lea.sflag [#allocation3], 1
    %13 = vsyncpa %s12, 0
    %14 = vsyncpa [#allocation6], 0
    %s15 = scalar_lea.sflag [#allocation6], 1
    %16 = vsyncpa %s15, 0
    %17 = vsyncpa [#allocation4], 0
    %s18 = scalar_lea.sflag [#allocation4], 1
    %19 = vsyncpa %s18, 0
    %20 = vsyncpa [#allocation10], 0
    %s21 = scalar_lea.sflag [#allocation10], 1
    %22 = vsyncpa %s21, 0
    loop: start=0, step=1, limit=4
    $region2: #{tpu_custom_call.1} parent=1 // loop_pre_header
      _
    $region3: #{tpu_custom_call.1} parent=1 // loop_header
      %s24 = sphi 0, %s28
      %p25 = scmp.ge.s32.totalorder %s24, 4
      %s31 = sphi 0, %s43
      %s32 = sphi 0, %s39
      %s33 = sphi 0, %s31
      %s34 = sphi 0, %s32
      %s35 = sphi 0, %s33
      %s36 = sphi 0, %s34
      %s48 = sphi 0, %s50
      %s51 = sphi 0, %s48
      %s52 = sphi 0, %s51
      %s68 = sphi 0, %s52
      %s74 = sphi 0, %s76
      %s77 = sphi 0, %s74
      %s78 = sphi 0, %s77
      %s94 = sphi 0, %s78
      %s100 = sphi 0, %s102
      %s103 = sphi 0, %s100
      %s104 = sphi 0, %s103
      %s120 = sphi 0, %s104
      %s128 = sphi 0, %s130
      %s131 = sphi 0, %s128
      %s132 = sphi 0, %s131
      %s148 = sphi 0, %s132
      %s156 = sphi 0, %s158
      %s159 = sphi 0, %s156
      %s160 = sphi 0, %s159
      %s176 = sphi 0, %s160
      %s184 = sphi 0, %s186
      %s187 = sphi 0, %s184
      %s188 = sphi 0, %s187
      %s204 = sphi 0, %s188
    $region4: #{tpu_custom_call.1} parent=1 // loop_header_branch
      %27 = sbr.rel (%p25) target = $region8
    $region5: #{tpu_custom_call.1} parent=1 // loop_body
      %s29 = ssub.s32 %s24, 1
      %s30 = ssub.s32 %s24, 2
      %s37 = sadd.s32 1, %s32
      %p38 = scmp.ge.s32.totalorder %s37, 1
      %s39 = scalar_select %p38, 0, %s37
      %s40 = sadd.s32 1, %s31
      %s41 = scalar_select %p38, %s40, %s31
      %p42 = scmp.ge.s32.totalorder %s41, 2
      %s43 = scalar_select %p42, 0, %s41
      %s44 = ssub.s32 %s31, %s43
      %s45 = ssub.s32 %s32, %s39
      %s46 = sor.u32 %s44, %s45
      %p47 = scmp.eq.s32.totalorder %s46, 0
      %s49 = sadd.s32 %s48, 1
      %s50 = scalar_select %p47, %s48, %s49
      %p53 = pneg %p47
      %p54 = scmp.eq.s32.totalorder %s24, 1
      %p55 = por %p53, %p54
      %p56 = scmp.ne.s32.totalorder %s48, %s51
      %p57 = scmp.eq.s32.totalorder %s24, 0
      %p58 = por %p56, %p57
      %p59 = scmp.ne.s32.totalorder %s48, %s51
      %p60 = scmp.eq.s32.totalorder %s29, 1
      %p61 = por %p59, %p60
      %p62 = scmp.ne.s32.totalorder %s51, %s52
      %p63 = scmp.eq.s32.totalorder %s29, 0
      %p64 = por %p62, %p63
      %p65 = scmp.ne.s32.totalorder %s51, %s52
      %p66 = scmp.eq.s32.totalorder %s30, 1
      %p67 = por %p65, %p66
      %p69 = scmp.ne.s32.totalorder %s52, %s68
      %p70 = scmp.eq.s32.totalorder %s30, 0
      %p71 = por %p69, %p70
      %s72 = ssub.s32 %s31, %s43
      %p73 = scmp.eq.s32.totalorder %s72, 0
      %s75 = sadd.s32 %s74, 1
      %s76 = scalar_select %p73, %s74, %s75
      %p79 = pneg %p73
      %p80 = scmp.eq.s32.totalorder %s24, 1
      %p81 = por %p79, %p80
      %p82 = scmp.ne.s32.totalorder %s74, %s77
      %p83 = scmp.eq.s32.totalorder %s24, 0
      %p84 = por %p82, %p83
      %p85 = scmp.ne.s32.totalorder %s74, %s77
      %p86 = scmp.eq.s32.totalorder %s29, 1
      %p87 = por %p85, %p86
      %p88 = scmp.ne.s32.totalorder %s77, %s78
      %p89 = scmp.eq.s32.totalorder %s29, 0
      %p90 = por %p88, %p89
      %p91 = scmp.ne.s32.totalorder %s77, %s78
      %p92 = scmp.eq.s32.totalorder %s30, 1
      %p93 = por %p91, %p92
      %p95 = scmp.ne.s32.totalorder %s78, %s94
      %p96 = scmp.eq.s32.totalorder %s30, 0
      %p97 = por %p95, %p96
      %s98 = ssub.s32 %s31, %s43
      %p99 = scmp.eq.s32.totalorder %s98, 0
      %s101 = sadd.s32 %s100, 1
      %s102 = scalar_select %p99, %s100, %s101
      %p105 = pneg %p99
      %p106 = scmp.eq.s32.totalorder %s24, 1
      %p107 = por %p105, %p106
      %p108 = scmp.ne.s32.totalorder %s100, %s103
      %p109 = scmp.eq.s32.totalorder %s24, 0
      %p110 = por %p108, %p109
      %p111 = scmp.ne.s32.totalorder %s100, %s103
      %p112 = scmp.eq.s32.totalorder %s29, 1
      %p113 = por %p111, %p112
      %p114 = scmp.ne.s32.totalorder %s103, %s104
      %p115 = scmp.eq.s32.totalorder %s29, 0
      %p116 = por %p114, %p115
      %p117 = scmp.ne.s32.totalorder %s103, %s104
      %p118 = scmp.eq.s32.totalorder %s30, 1
      %p119 = por %p117, %p118
      %p121 = scmp.ne.s32.totalorder %s104, %s120
      %p122 = scmp.eq.s32.totalorder %s30, 0
      %p123 = por %p121, %p122
      %s124 = ssub.s32 %s31, %s43
      %s125 = ssub.s32 %s32, %s39
      %s126 = sor.u32 %s124, %s125
      %p127 = scmp.eq.s32.totalorder %s126, 0
      %s129 = sadd.s32 %s128, 1
      %s130 = scalar_select %p127, %s128, %s129
      %p133 = pneg %p127
      %p134 = scmp.eq.s32.totalorder %s24, 1
      %p135 = por %p133, %p134
      %p136 = scmp.ne.s32.totalorder %s128, %s131
      %p137 = scmp.eq.s32.totalorder %s24, 0
      %p138 = por %p136, %p137
      %p139 = scmp.ne.s32.totalorder %s128, %s131
      %p140 = scmp.eq.s32.totalorder %s29, 1
      %p141 = por %p139, %p140
      %p142 = scmp.ne.s32.totalorder %s131, %s132
      %p143 = scmp.eq.s32.totalorder %s29, 0
      %p144 = por %p142, %p143
      %p145 = scmp.ne.s32.totalorder %s131, %s132
      %p146 = scmp.eq.s32.totalorder %s30, 1
      %p147 = por %p145, %p146
      %p149 = scmp.ne.s32.totalorder %s132, %s148
      %p150 = scmp.eq.s32.totalorder %s30, 0
      %p151 = por %p149, %p150
      %s152 = ssub.s32 %s31, %s43
      %s153 = ssub.s32 %s32, %s39
      %s154 = sor.u32 %s152, %s153
      %p155 = scmp.eq.s32.totalorder %s154, 0
      %s157 = sadd.s32 %s156, 1
      %s158 = scalar_select %p155, %s156, %s157
      %p161 = pneg %p155
      %p162 = scmp.eq.s32.totalorder %s24, 1
      %p163 = por %p161, %p162
      %p164 = scmp.ne.s32.totalorder %s156, %s159
      %p165 = scmp.eq.s32.totalorder %s24, 0
      %p166 = por %p164, %p165
      %p167 = scmp.ne.s32.totalorder %s156, %s159
      %p168 = scmp.eq.s32.totalorder %s29, 1
      %p169 = por %p167, %p168
      %p170 = scmp.ne.s32.totalorder %s159, %s160
      %p171 = scmp.eq.s32.totalorder %s29, 0
      %p172 = por %p170, %p171
      %p173 = scmp.ne.s32.totalorder %s159, %s160
      %p174 = scmp.eq.s32.totalorder %s30, 1
      %p175 = por %p173, %p174
      %p177 = scmp.ne.s32.totalorder %s160, %s176
      %p178 = scmp.eq.s32.totalorder %s30, 0
      %p179 = por %p177, %p178
      %s180 = ssub.s32 %s31, %s43
      %s181 = ssub.s32 %s32, %s39
      %s182 = sor.u32 %s180, %s181
      %p183 = scmp.eq.s32.totalorder %s182, 0
      %s185 = sadd.s32 %s184, 1
      %s186 = scalar_select %p183, %s184, %s185
      %p189 = pneg %p183
      %p190 = scmp.eq.s32.totalorder %s24, 1
      %p191 = por %p189, %p190
      %p192 = scmp.ne.s32.totalorder %s184, %s187
      %p193 = scmp.eq.s32.totalorder %s24, 0
      %p194 = por %p192, %p193
      %p195 = scmp.ne.s32.totalorder %s184, %s187
      %p196 = scmp.eq.s32.totalorder %s29, 1
      %p197 = por %p195, %p196
      %p198 = scmp.ne.s32.totalorder %s187, %s188
      %p199 = scmp.eq.s32.totalorder %s29, 0
      %p200 = por %p198, %p199
      %p201 = scmp.ne.s32.totalorder %s187, %s188
      %p202 = scmp.eq.s32.totalorder %s30, 1
      %p203 = por %p201, %p202
      %p205 = scmp.ne.s32.totalorder %s188, %s204
      %p206 = scmp.eq.s32.totalorder %s30, 0
      %p207 = por %p205, %p206
      %p208 = scmp.le.s32.totalorder 1, %s24
      %p209 = scmp.lt.s32.totalorder %s24, 3
      %p210 = pnand %p208, %p209
      %p211 = pneg %p210
      // Predicated region
      $region9: #{tpu_custom_call.1} parent=5 // pred_check
        _
      $region10: #{tpu_custom_call.1} parent=5 // pred_check_branch
        %213 = sbr.rel (%p210) target = $region12
      $region11: #{tpu_custom_call.1} parent=5 // pred_region
        %s214 = ssub.s32 %s24, 1
      $region12: #{tpu_custom_call.1} parent=5 // pred_fallthru
        _
      %p215 = scmp.lt.s32.totalorder %s24, 2
      // Predicated region
      $region13: #{tpu_custom_call.1} parent=5 // pred_check
        %p216 = pneg %p215
      $region14: #{tpu_custom_call.1} parent=5 // pred_check_branch
        %218 = sbr.rel (%p216) target = $region16
      $region15: #{tpu_custom_call.1} parent=5 // pred_region
        // Predicated region
        $region17: #{tpu_custom_call.1} parent=15 // pred_check
          %p219 = pneg %p58
        $region18: #{tpu_custom_call.1} parent=15 // pred_check_branch
          %221 = sbr.rel (%p219) target = $region20
        $region19: #{tpu_custom_call.1} parent=15 // pred_region
          %s222 = sand.u32 %s48, 1
          %s223 = scalar_lea.sflag [#allocation3], %s222
          %s224 = sand.u32 %s48, 1
          %s225 = smul.addr %s224, 8
          %s226 = scalar_lea.vmem [#allocation2], %s225
          %s228 = ssub.s32 128, 128
          %229 = vsyncadd %s223, %s228
          %s230 = sadd.s32 %s32, %s31
          %s231 = smul.addr %s230, 128
          %s232 = scalar_lea.hbm %s0, %s231
          %s234 = sshll.u32 %s226, 4
          %s235 = int_to_ptr.vmem [resolvable:$true] %s234
          %237 = dma.hbm_to_vmem [thread:$0]  %s232, 128, %s235, %s223
        $region20: #{tpu_custom_call.1} parent=15 // pred_fallthru
          _
        // Predicated region
        $region21: #{tpu_custom_call.1} parent=15 // pred_check
          %p238 = pneg %p84
        $region22: #{tpu_custom_call.1} parent=15 // pred_check_branch
          %240 = sbr.rel (%p238) target = $region24
        $region23: #{tpu_custom_call.1} parent=15 // pred_region
          %s241 = sand.u32 %s24, 1
          %s242 = scalar_lea.sflag [#allocation6], %s241
          %s243 = sand.u32 %s74, 1
          %s244 = smul.addr %s243, 16
          %s245 = scalar_lea.vmem [#allocation5], %s244
          %s247 = ssub.s32 256, 256
          %248 = vsyncadd %s242, %s247
          %s249 = smul.addr %s31, 2
          %s250 = smul.addr %s249, 128
          %s251 = scalar_lea.hbm %s1, %s250
          %s252 = sshll.u32 %s245, 4
          %s253 = int_to_ptr.vmem [resolvable:$true] %s252
          %258 = dma.hbm_to_vmem [thread:$0]  %s251, 256, %s253, %s242, 128, 128, 8
        $region24: #{tpu_custom_call.1} parent=15 // pred_fallthru
          _
        // Predicated region
        $region25: #{tpu_custom_call.1} parent=15 // pred_check
          %p259 = pneg %p110
        $region26: #{tpu_custom_call.1} parent=15 // pred_check_branch
          %261 = sbr.rel (%p259) target = $region28
        $region27: #{tpu_custom_call.1} parent=15 // pred_region
          %s262 = sand.u32 %s24, 1
          %s263 = scalar_lea.sflag [#allocation6], %s262
          %s264 = sand.u32 %s100, 1
          %s265 = smul.addr %s264, 16
          %s266 = scalar_lea.vmem [#allocation7], %s265
          %s268 = ssub.s32 256, 256
          %269 = vsyncadd %s263, %s268
          %s270 = smul.addr %s31, 2
          %s271 = smul.addr %s270, 128
          %s272 = scalar_lea.hbm %s2, %s271
          %s273 = sshll.u32 %s266, 4
          %s274 = int_to_ptr.vmem [resolvable:$true] %s273
          %279 = dma.hbm_to_vmem [thread:$0]  %s272, 256, %s274, %s263, 128, 128, 8
        $region28: #{tpu_custom_call.1} parent=15 // pred_fallthru
          _
      $region16: #{tpu_custom_call.1} parent=5 // pred_fallthru
        _
      %p280 = scmp.le.s32.totalorder 1, %s24
      %p281 = scmp.lt.s32.totalorder %s24, 3
      %p282 = pnand %p280, %p281
      %p283 = pneg %p282
      // Predicated region
      $region29: #{tpu_custom_call.1} parent=5 // pred_check
        _
      $region30: #{tpu_custom_call.1} parent=5 // pred_check_branch
        %285 = sbr.rel (%p282) target = $region32
      $region31: #{tpu_custom_call.1} parent=5 // pred_region
        %s286 = ssub.s32 %s24, 1
        %s287 = sand.u32 %s51, 1
        %s288 = scalar_lea.sflag [#allocation3], %s287
        %s289 = sand.u32 %s51, 1
        %s290 = smul.addr %s289, 8
        %s291 = scalar_lea.vmem [#allocation2], %s290
        // Predicated region
        $region33: #{tpu_custom_call.1} parent=31 // pred_check
          %p292 = pneg %p64
        $region34: #{tpu_custom_call.1} parent=31 // pred_check_branch
          %294 = sbr.rel (%p292) target = $region36
        $region35: #{tpu_custom_call.1} parent=31 // pred_region
          %295 = dma.done %s288, 128
        $region36: #{tpu_custom_call.1} parent=31 // pred_fallthru
          _
        %s296 = sand.u32 %s29, 1
        %s297 = scalar_lea.sflag [#allocation6], %s296
        %s298 = sand.u32 %s77, 1
        %s299 = smul.addr %s298, 16
        %s300 = scalar_lea.vmem [#allocation5], %s299
        // Predicated region
        $region37: #{tpu_custom_call.1} parent=31 // pred_check
          %p301 = pneg %p90
        $region38: #{tpu_custom_call.1} parent=31 // pred_check_branch
          %303 = sbr.rel (%p301) target = $region40
        $region39: #{tpu_custom_call.1} parent=31 // pred_region
          %304 = dma.done %s297, 256
        $region40: #{tpu_custom_call.1} parent=31 // pred_fallthru
          _
        %s305 = sand.u32 %s29, 1
        %s306 = scalar_lea.sflag [#allocation6], %s305
        %s307 = sand.u32 %s103, 1
        %s308 = smul.addr %s307, 16
        %s309 = scalar_lea.vmem [#allocation7], %s308
        // Predicated region
        $region41: #{tpu_custom_call.1} parent=31 // pred_check
          %p310 = pneg %p116
        $region42: #{tpu_custom_call.1} parent=31 // pred_check_branch
          %312 = sbr.rel (%p310) target = $region44
        $region43: #{tpu_custom_call.1} parent=31 // pred_region
          %313 = dma.done %s306, 256
        $region44: #{tpu_custom_call.1} parent=31 // pred_fallthru
          _
        %s314 = sand.u32 %s51, 1
        %s315 = scalar_lea.sflag [#allocation3], %s314
        %s316 = sand.u32 %s51, 1
        %s317 = smul.addr %s316, 8
        %s318 = scalar_lea.vmem [#allocation2], %s317
        %p319 = pneg %p64
        %p320 = pneg %p61
        %s321 = sand.u32 %s29, 1
        %s322 = scalar_lea.sflag [#allocation6], %s321
        %s323 = sand.u32 %s77, 1
        %s324 = smul.addr %s323, 16
        %s325 = scalar_lea.vmem [#allocation5], %s324
        %p326 = pneg %p90
        %p327 = pneg %p87
        %s328 = sand.u32 %s29, 1
        %s329 = scalar_lea.sflag [#allocation6], %s328
        %s330 = sand.u32 %s103, 1
        %s331 = smul.addr %s330, 16
        %s332 = scalar_lea.vmem [#allocation7], %s331
        %p333 = pneg %p116
        %p334 = pneg %p113
        %p335 = pneg %p144
        %p336 = pneg %p141
        %s337 = sand.u32 %s131, 1
        %s338 = scalar_lea.sflag [#allocation4], %s337
        %s339 = sand.u32 %s131, 1
        %s340 = smul.addr %s339, 8
        %s341 = scalar_lea.vmem [#allocation8], %s340
        %p342 = pneg %p172
        %p343 = pneg %p169
        %s344 = sand.u32 %s29, 1
        %s345 = scalar_lea.sflag [#allocation10], %s344
        %s346 = sand.u32 %s159, 1
        %s347 = smul.addr %s346, 8
        %s348 = scalar_lea.vmem [#allocation9], %s347
        %p349 = pneg %p200
        %p350 = pneg %p197
        %s351 = sand.u32 %s29, 1
        %s352 = scalar_lea.sflag [#allocation10], %s351
        %s353 = sand.u32 %s187, 1
        %s354 = smul.addr %s353, 8
        %s355 = scalar_lea.vmem [#allocation11], %s354
        %v356 = vld [vmem:[%s291] sm:$0xff]
        %v357 = vmul.f32 %v356, 0.17677669
        %v358 = vld [vmem:[%s300] sm:$0xff]
        %v359 = vld [vmem:[%s300 + $0x8] sm:$0xff]
        %v360 = vld [vmem:[%s309] sm:$0xff]
        %v361 = vld [vmem:[%s309 + $0x8] sm:$0xff]
        %vm362 = vcmask 261120
        %v364 = vsel %vm362, %v357, 0
        %v367 = vsel %vm362, %v358, 0
        %v370 = vsel %vm362, %v359, 0
        %372 = vmatprep.subr.mxu0 0.0
        %373 = vmatpush1.xpose.msra.mxu0 %v367
        %374 = vmatprep.subr.mxu0 0.0
        %375 = vmatpush1.xpose.msra.mxu0 %v370
        %376 = vmatprep.subr.mxu0 0.0
        %377 = vmatpush1.xpose.msra.mxu0 0.0
        %378 = vmatprep.subr.mxu0 0.0
        %379 = vmatpush1.xpose.msra.mxu0 0.0
        %380 = vmatprep.subr.mxu0 0.0
        %381 = vmatpush1.xpose.msra.mxu0 0.0
        %382 = vmatprep.subr.mxu0 0.0
        %383 = vmatpush1.xpose.msra.mxu0 0.0
        %384 = vmatprep.subr.mxu0 0.0
        %385 = vmatpush1.xpose.msra.mxu0 0.0
        %386 = vmatprep.subr.mxu0 0.0
        %387 = vmatpush1.xpose.msra.mxu0 0.0
        %388 = vmatprep.subr.mxu0 0.0
        %389 = vmatpush1.xpose.msra.mxu0 0.0
        %390 = vmatprep.subr.mxu0 0.0
        %391 = vmatpush1.xpose.msra.mxu0 0.0
        %392 = vmatprep.subr.mxu0 0.0
        %393 = vmatpush1.xpose.msra.mxu0 0.0
        %394 = vmatprep.subr.mxu0 0.0
        %395 = vmatpush1.xpose.msra.mxu0 0.0
        %396 = vmatprep.subr.mxu0 0.0
        %397 = vmatpush1.xpose.msra.mxu0 0.0
        %398 = vmatprep.subr.mxu0 0.0
        %399 = vmatpush1.xpose.msra.mxu0 0.0
        %400 = vmatprep.subr.mxu0 0.0
        %401 = vmatpush1.xpose.msra.mxu0 0.0
        %402 = vmatprep.subr.mxu0 0.0
        %403 = vmatpush1.xpose.msra.mxu0 0.0
        %404 = vmatprep.subr.mxu0 0.0
        %405 = vmatpush1.xpose.msra.mxu0 0.0
        %406 = vmatprep.subr.mxu0 0.0
        %407 = vmatpush1.xpose.msra.mxu0 0.0
        %408 = vmatprep.subr.mxu0 0.0
        %409 = vmatpush1.xpose.msra.mxu0 0.0
        %410 = vmatprep.subr.mxu0 0.0
        %411 = vmatpush1.xpose.msra.mxu0 0.0
        %412 = vmatprep.subr.mxu0 0.0
        %413 = vmatpush1.xpose.msra.mxu0 0.0
        %414 = vmatprep.subr.mxu0 0.0
        %415 = vmatpush1.xpose.msra.mxu0 0.0
        %416 = vmatprep.subr.mxu0 0.0
        %417 = vmatpush1.xpose.msra.mxu0 0.0
        %418 = vmatprep.subr.mxu0 0.0
        %419 = vmatpush1.xpose.msra.mxu0 0.0
        %420 = vmatprep.subr.mxu0 0.0
        %421 = vmatpush1.xpose.msra.mxu0 0.0
        %422 = vmatprep.subr.mxu0 0.0
        %423 = vmatpush1.xpose.msra.mxu0 0.0
        %424 = vmatprep.subr.mxu0 0.0
        %425 = vmatpush1.xpose.msra.mxu0 0.0
        %426 = vmatprep.subr.mxu0 0.0
        %427 = vmatpush1.xpose.msra.mxu0 0.0
        %428 = vmatprep.subr.mxu0 0.0
        %429 = vmatpush1.xpose.msra.mxu0 0.0
        %430 = vmatprep.subr.mxu0 0.0
        %431 = vmatpush1.xpose.msra.mxu0 0.0
        %432 = vmatprep.subr.mxu0 0.0
        %433 = vmatpush1.xpose.msra.mxu0 0.0
        %434 = vmatprep.subr.mxu0 0.0
        %435 = vmatpush1.xpose.msra.mxu0 0.0
        %436 = vmatprep.mubr.f32.mxu0 0.0
        %437 = vmatmul.mubr.f32.gmra.mrb[0].mxu0 %v364
        %v438 = vpop.f32.mrb[0].mxu0
        %v439 = vadd.f32 0.0, %v438
        %v440 = vpop.f32.mrb[0].mxu0
        %441 = vdwg.mxu0
        %vm442 = vcmask 130048
        %v443 = vsel %vm442, %v439, -inf
        %444 = vmax.xlane.f32.xlu0 %v443
        %v445 = vpop.xlane.xlu0 %444
        %v446 = vsub.f32 %v439, %v445
        %v447 = vmul.f32 %v446, 1.442695
        %v448 = vpow.pop %v447
        %v449 = vsel %vm442, %v448, 0.0
        %450 = vadd.xlane.f32.xlu0 %v449
        %v451 = vpop.xlane.xlu0 %450
        %v452 = vrcp.pop %v451
        %v453 = vmul.f32 %v448, %v452
        %v454 = vlog2.pop %v451
        %v455 = vmul.f32 %v454, 0.6931472
        %v456 = vsub.f32 %v446, %v455
        %v458 = vsel %vm442, %v453, 0
        %460 = vmatprep.subr.mxu0 0.0
        %461 = vmatpush1.msra.mxu0 %v360
        %462 = vmatprep.subr.mxu0 0.0
        %463 = vmatpush1.msra.mxu0 %v361
        %464 = vmatprep.subr.mxu0 0.0
        %465 = vmatpush1.msra.mxu0 0.0
        %466 = vmatprep.subr.mxu0 0.0
        %467 = vmatpush1.msra.mxu0 0.0
        %468 = vmatprep.subr.mxu0 0.0
        %469 = vmatpush1.msra.mxu0 0.0
        %470 = vmatprep.subr.mxu0 0.0
        %471 = vmatpush1.msra.mxu0 0.0
        %472 = vmatprep.subr.mxu0 0.0
        %473 = vmatpush1.msra.mxu0 0.0
        %474 = vmatprep.subr.mxu0 0.0
        %475 = vmatpush1.msra.mxu0 0.0
        %476 = vmatprep.subr.mxu0 0.0
        %477 = vmatpush1.msra.mxu0 0.0
        %478 = vmatprep.subr.mxu0 0.0
        %479 = vmatpush1.msra.mxu0 0.0
        %480 = vmatprep.subr.mxu0 0.0
        %481 = vmatpush1.msra.mxu0 0.0
        %482 = vmatprep.subr.mxu0 0.0
        %483 = vmatpush1.msra.mxu0 0.0
        %484 = vmatprep.subr.mxu0 0.0
        %485 = vmatpush1.msra.mxu0 0.0
        %486 = vmatprep.subr.mxu0 0.0
        %487 = vmatpush1.msra.mxu0 0.0
        %488 = vmatprep.subr.mxu0 0.0
        %489 = vmatpush1.msra.mxu0 0.0
        %490 = vmatprep.subr.mxu0 0.0
        %491 = vmatpush1.msra.mxu0 0.0
        %492 = vmatprep.subr.mxu0 0.0
        %493 = vmatpush1.msra.mxu0 0.0
        %494 = vmatprep.subr.mxu0 0.0
        %495 = vmatpush1.msra.mxu0 0.0
        %496 = vmatprep.subr.mxu0 0.0
        %497 = vmatpush1.msra.mxu0 0.0
        %498 = vmatprep.subr.mxu0 0.0
        %499 = vmatpush1.msra.mxu0 0.0
        %500 = vmatprep.subr.mxu0 0.0
        %501 = vmatpush1.msra.mxu0 0.0
        %502 = vmatprep.subr.mxu0 0.0
        %503 = vmatpush1.msra.mxu0 0.0
        %504 = vmatprep.subr.mxu0 0.0
        %505 = vmatpush1.msra.mxu0 0.0
        %506 = vmatprep.subr.mxu0 0.0
        %507 = vmatpush1.msra.mxu0 0.0
        %508 = vmatprep.subr.mxu0 0.0
        %509 = vmatpush1.msra.mxu0 0.0
        %510 = vmatprep.subr.mxu0 0.0
        %511 = vmatpush1.msra.mxu0 0.0
        %512 = vmatprep.subr.mxu0 0.0
        %513 = vmatpush1.msra.mxu0 0.0
        %514 = vmatprep.subr.mxu0 0.0
        %515 = vmatpush1.msra.mxu0 0.0
        %516 = vmatprep.subr.mxu0 0.0
        %517 = vmatpush1.msra.mxu0 0.0
        %518 = vmatprep.subr.mxu0 0.0
        %519 = vmatpush1.msra.mxu0 0.0
        %520 = vmatprep.subr.mxu0 0.0
        %521 = vmatpush1.msra.mxu0 0.0
        %522 = vmatprep.subr.mxu0 0.0
        %523 = vmatpush1.msra.mxu0 0.0
        %524 = vmatprep.mubr.f32.mxu0 0.0
        %525 = vmatmul.mubr.f32.gmra.mrb[0].mxu0 %v458
        %v526 = vpop.f32.mrb[0].mxu0
        %v527 = vadd.f32 0.0, %v526
        %v528 = vpop.f32.mrb[0].mxu0
        %529 = vdwg.mxu0
        %530 = vst.msk [vmem:[%s341] sm:$0xff] %vm362, %v527
        %531 = vst.msk [vmem:[%s348] sm:$0xff] %vm442, %v453
        %532 = vst.msk [vmem:[%s355] sm:$0xff] %vm442, %v456
        %s533 = sand.u32 %s131, 1
        %s534 = scalar_lea.sflag [#allocation4], %s533
        %s535 = sand.u32 %s131, 1
        %s536 = smul.addr %s535, 8
        %s537 = scalar_lea.vmem [#allocation8], %s536
        %s538 = sand.u32 %s29, 1
        %s539 = scalar_lea.sflag [#allocation10], %s538
        %s540 = sand.u32 %s159, 1
        %s541 = smul.addr %s540, 8
        %s542 = scalar_lea.vmem [#allocation9], %s541
        %s543 = sand.u32 %s29, 1
        %s544 = scalar_lea.sflag [#allocation10], %s543
        %s545 = sand.u32 %s187, 1
        %s546 = smul.addr %s545, 8
        %s547 = scalar_lea.vmem [#allocation11], %s546
        // Predicated region
        $region45: #{tpu_custom_call.1} parent=31 // pred_check
          %p548 = pneg %p141
        $region46: #{tpu_custom_call.1} parent=31 // pred_check_branch
          %550 = sbr.rel (%p548) target = $region48
        $region47: #{tpu_custom_call.1} parent=31 // pred_region
          %s552 = ssub.s32 128, 128
          %553 = vsyncadd %s534, %s552
          %s554 = sadd.s32 %s34, %s33
          %s555 = smul.addr %s554, 128
          %s556 = scalar_lea.hbm %s3, %s555
          %s558 = sshll.u32 %s537, 4
          %s559 = int_to_ptr.vmem [resolvable:$true] %s558
          %561 = dma.vmem_to_hbm [thread:$0]  %s559, 128, %s556, %s534
        $region48: #{tpu_custom_call.1} parent=31 // pred_fallthru
          _
        // Predicated region
        $region49: #{tpu_custom_call.1} parent=31 // pred_check
          %p562 = pneg %p169
        $region50: #{tpu_custom_call.1} parent=31 // pred_check_branch
          %564 = sbr.rel (%p562) target = $region52
        $region51: #{tpu_custom_call.1} parent=31 // pred_region
          %s566 = ssub.s32 128, 128
          %567 = vsyncadd %s539, %s566
          %s568 = sadd.s32 %s34, %s33
          %s569 = smul.addr %s568, 128
          %s570 = scalar_lea.hbm %s4, %s569
          %s572 = sshll.u32 %s542, 4
          %s573 = int_to_ptr.vmem [resolvable:$true] %s572
          %575 = dma.vmem_to_hbm [thread:$0]  %s573, 128, %s570, %s539
        $region52: #{tpu_custom_call.1} parent=31 // pred_fallthru
          _
        // Predicated region
        $region53: #{tpu_custom_call.1} parent=31 // pred_check
          %p576 = pneg %p197
        $region54: #{tpu_custom_call.1} parent=31 // pred_check_branch
          %578 = sbr.rel (%p576) target = $region56
        $region55: #{tpu_custom_call.1} parent=31 // pred_region
          %s580 = ssub.s32 128, 128
          %581 = vsyncadd %s544, %s580
          %s582 = sadd.s32 %s34, %s33
          %s583 = smul.addr %s582, 128
          %s584 = scalar_lea.hbm %s5, %s583
          %s586 = sshll.u32 %s547, 4
          %s587 = int_to_ptr.vmem [resolvable:$true] %s586
          %589 = dma.vmem_to_hbm [thread:$0]  %s587, 128, %s584, %s544
        $region56: #{tpu_custom_call.1} parent=31 // pred_fallthru
          _
      $region32: #{tpu_custom_call.1} parent=5 // pred_fallthru
        _
      %p590 = scmp.le.s32.totalorder 2, %s24
      // Predicated region
      $region57: #{tpu_custom_call.1} parent=5 // pred_check
        %p591 = pneg %p590
      $region58: #{tpu_custom_call.1} parent=5 // pred_check_branch
        %593 = sbr.rel (%p591) target = $region60
      $region59: #{tpu_custom_call.1} parent=5 // pred_region
        %s594 = ssub.s32 %s24, 2
        // Predicated region
        $region61: #{tpu_custom_call.1} parent=59 // pred_check
          %p595 = pneg %p147
        $region62: #{tpu_custom_call.1} parent=59 // pred_check_branch
          %597 = sbr.rel (%p595) target = $region64
        $region63: #{tpu_custom_call.1} parent=59 // pred_region
          %s598 = sand.u32 %s132, 1
          %s599 = scalar_lea.sflag [#allocation4], %s598
          %s600 = sand.u32 %s132, 1
          %s601 = smul.addr %s600, 8
          %s602 = scalar_lea.vmem [#allocation8], %s601
          %603 = dma.done %s599, 128
        $region64: #{tpu_custom_call.1} parent=59 // pred_fallthru
          _
        // Predicated region
        $region65: #{tpu_custom_call.1} parent=59 // pred_check
          %p604 = pneg %p175
        $region66: #{tpu_custom_call.1} parent=59 // pred_check_branch
          %606 = sbr.rel (%p604) target = $region68
        $region67: #{tpu_custom_call.1} parent=59 // pred_region
          %s607 = sand.u32 %s30, 1
          %s608 = scalar_lea.sflag [#allocation10], %s607
          %s609 = sand.u32 %s160, 1
          %s610 = smul.addr %s609, 8
          %s611 = scalar_lea.vmem [#allocation9], %s610
          %612 = dma.done %s608, 128
        $region68: #{tpu_custom_call.1} parent=59 // pred_fallthru
          _
        // Predicated region
        $region69: #{tpu_custom_call.1} parent=59 // pred_check
          %p613 = pneg %p203
        $region70: #{tpu_custom_call.1} parent=59 // pred_check_branch
          %615 = sbr.rel (%p613) target = $region72
        $region71: #{tpu_custom_call.1} parent=59 // pred_region
          %s616 = sand.u32 %s30, 1
          %s617 = scalar_lea.sflag [#allocation10], %s616
          %s618 = sand.u32 %s188, 1
          %s619 = smul.addr %s618, 8
          %s620 = scalar_lea.vmem [#allocation11], %s619
          %621 = dma.done %s617, 128
        $region72: #{tpu_custom_call.1} parent=59 // pred_fallthru
          _
      $region60: #{tpu_custom_call.1} parent=5 // pred_fallthru
        _
    $region6: #{tpu_custom_call.1} parent=1 // loop_footer
      %s28 = sadd.s32 1, %s24
    $region7: #{tpu_custom_call.1} parent=1 // loop_footer_branch
      %23 = sbr.rel target = $region3
    $region8: #{tpu_custom_call.1} parent=1 // loop_exit
      _
    %622 = vsyncpa [#allocation3], 1
    %s623 = scalar_lea.sflag [#allocation3], 1
    %624 = vsyncpa %s623, 1
    %625 = vsyncpa [#allocation6], 1
    %s626 = scalar_lea.sflag [#allocation6], 1
    %627 = vsyncpa %s626, 1
    %628 = vsyncpa [#allocation4], 1
    %s629 = scalar_lea.sflag [#allocation4], 1
    %630 = vsyncpa %s629, 1
    %631 = vsyncpa [#allocation10], 1
    %s632 = scalar_lea.sflag [#allocation10], 1
    %633 = vsyncpa %s632, 1

</llo_original>
